<compile_context>
chip_gen: v7x
topology: tpu7x:2x2x1
jax: 0.10.0
libtpu: 0.0.40
codegen_flags: <defaults>
</compile_context>

<pallas_src>
import functools

import jax
import jax.numpy as jnp
from jax.experimental import pallas as pl
from jax.experimental.pallas import tpu as pltpu

# ----------------------------- model config --------------------------------
N_LAYERS = 3          # number of hidden (n_units -> n_units) layers
N_UNITS = 32
N_INPUTS = 2          # "xy" input
NEURONS_OUT = 1
ACT = "tanh"          # module default

_LANE = 128           # TPU lane width; batch tiles are multiples of this
_MAX_TILE_B = 8192    # raised per review; VMEM footprint is still tiny
_STEP_OVERHEAD_CHUNKS = 4.0   # one grid step's fixed cost, in 128-lane-chunks of compute


def _act(x):
    if ACT == "tanh":
        return jnp.tanh(x)
    elif ACT == "relu":
        return jnp.maximum(x, jnp.zeros((), x.dtype))
    raise NotImplementedError


def _round_up(n, m):
    return ((n + m - 1) // m) * m


def _vpu_eup_have_bf16():
    """bf16 elementwise/transcendental datapath exists on v6e / v7x only."""
    kind = jax.devices()[0].device_kind.lower()
    return ("v6" in kind) or ("v7" in kind)


def _choose_tile_b(batch):
    """Lane-aligned batch tile: few (>=2, even-preferred) grid steps, low padding."""
    b_pad_min = _round_up(batch, _LANE)
    n_chunks = b_pad_min // _LANE
    max_chunks = _MAX_TILE_B // _LANE
    if n_chunks <= 1:
        return _LANE
    best_cost, best_k = None, 1
    for k in range(1, min(n_chunks, max_chunks) + 1):
        steps = pl.cdiv(n_chunks, k)
        if steps < 2:                       # keep >=2 steps so megacore has work
            continue
        pad = steps * k - n_chunks          # dead 128-lane chunks of compute
        imbalance = k if (steps % 2) else 0 # v7x: odd steps leave one TC idle last step
        cost = steps * _STEP_OVERHEAD_CHUNKS + pad + imbalance
        if best_cost is None or cost < best_cost:
            best_cost, best_k = cost, k
    return best_k * _LANE


# ------------------------------- kernel ------------------------------------
def mlp_ode_kernel(x_ref, w_in_ref, b_in_ref, w_h_ref, b_h_ref,
                   w_out_ref, b_out_ref, o_ref, *,
                   n_layers, eltwise_dtype, matmul_dtype):
    # Activations: (features, tile_b) -> batch on the lane axis (dense I/O).
    n_inputs = x_ref.shape[0]

    # ---- input layer --------------------------------------------------------
    if n_inputs <= 8:
        # K is tiny: two VPU broadcast-FMAs instead of an <2%-utilized MXU dot.
        x = x_ref[...]                              # (n_inputs, tile_b) f32
        w_in = w_in_ref[...]                        # (n_units, n_inputs) f32
        h = b_in_ref[...] + w_in[:, 0:1] * x[0:1, :]
        for k in range(1, n_inputs):                # static -> unrolled
            h = h + w_in[:, k:k + 1] * x[k:k + 1, :]
    else:
        h = jnp.dot(w_in_ref[...], x_ref[...].astype(matmul_dtype),
                    preferred_element_type=jnp.float32) + b_in_ref[...]

    # ---- hidden stack: act (bf16 on v6e/v7x) + bf16 MXU dot, f32 accumulate --
    for i in range(n_layers):                       # static -> unrolled
        h = _act(h.astype(eltwise_dtype))
        # slice the weight right before its MXU push (short live range)
        h = jnp.dot(w_h_ref[i], h.astype(matmul_dtype),
                    preferred_element_type=jnp.float32) + b_h_ref[i]
    h = _act(h.astype(eltwise_dtype))

    # ---- output layer -------------------------------------------------------
    if o_ref.shape[0] == 1:
        # M=1: VPU multiply by broadcast w_out + XLU cross-sublane sum (MXU-free).
        out = jnp.sum(w_out_ref[...] * h.astype(jnp.float32),
                      axis=0, keepdims=True) + b_out_ref[...]
    else:
        out = jnp.dot(w_out_ref[...], h.astype(matmul_dtype),
                      preferred_element_type=jnp.float32) + b_out_ref[...]
    o_ref[...] = out.astype(o_ref.dtype)


# ------------------------------ wrapper -------------------------------------
def mlp_ode_forward(x, params, *, tile_b=None, bf16_matmul=True,
                    bf16_eltwise=None, x_transposed=False):
    """Forward pass.

    x: (B, n_inputs) f32, or (n_inputs, B) if x_transposed=True (skips the
       wrapper-side transpose). Returns (B, neurons_out) f32.
    params follow torch.nn.Linear layout: W is (fan_out, fan_in); biases (fan_out, 1).
    bf16_matmul:   cast MXU operands to bf16 (f32 accumulate).
    bf16_eltwise:  run tanh / bias chain in bf16; None -> auto (v6e/v7x only).
    """
    w_in, b_in, w_h, b_h, w_out, b_out = params
    if bf16_eltwise is None:
        bf16_eltwise = bf16_matmul and _vpu_eup_have_bf16()
    mm_dtype = jnp.bfloat16 if bf16_matmul else jnp.float32
    el_dtype = jnp.bfloat16 if bf16_eltwise else jnp.float32

    if x_transposed:
        assert x.shape[0] == N_INPUTS
        batch = x.shape[1]
    else:
        assert x.shape[1] == N_INPUTS
        batch = x.shape[0]

    if tile_b is None:
        tile_b = _choose_tile_b(batch)
    assert tile_b % _LANE == 0, "tile_b must be a multiple of 128 (lane axis)"

    # pad batch to a multiple of tile_b (padded rows are sliced off at the end)
    b_pad = _round_up(batch, tile_b)
    if x_transposed:
        x_t = x if b_pad == batch else jnp.pad(x, ((0, 0), (0, b_pad - batch)))
    else:
        x_p = x if b_pad == batch else jnp.pad(x, ((0, b_pad - batch), (0, 0)))
        x_t = x_p.T                                   # (n_inputs, b_pad)

    # parameter presentation (tiny, one-time casts/transposes)
    input_on_vpu = N_INPUTS <= 8
    output_on_vpu = NEURONS_OUT == 1
    w_in_pass = w_in if input_on_vpu else w_in.astype(mm_dtype)
    w_h_pass = w_h.astype(mm_dtype)                   # bf16 MXU operands
    w_out_pass = w_out.T if output_on_vpu else w_out.astype(mm_dtype)

    grid = (b_pad // tile_b,)
    kernel = functools.partial(mlp_ode_kernel, n_layers=N_LAYERS,
                               eltwise_dtype=el_dtype, matmul_dtype=mm_dtype)

    out_t = pl.pallas_call(
        kernel,
        out_shape=jax.ShapeDtypeStruct((NEURONS_OUT, b_pad), jnp.float32),
        grid_spec=pltpu.PrefetchScalarGridSpec(
            num_scalar_prefetch=0,
            grid=grid,
            in_specs=[
                # lane-dense batch tile of the input
                pl.BlockSpec((N_INPUTS, tile_b), lambda i: (0, i)),
                # parameters: constant block index -> DMA'd once, VMEM-resident
                pl.BlockSpec(w_in_pass.shape, lambda i: (0, 0)),
                pl.BlockSpec((N_UNITS, 1), lambda i: (0, 0)),
                pl.BlockSpec((N_LAYERS, N_UNITS, N_UNITS), lambda i: (0, 0, 0)),
                pl.BlockSpec((N_LAYERS, N_UNITS, 1), lambda i: (0, 0, 0)),
                pl.BlockSpec(w_out_pass.shape, lambda i: (0, 0)),
                pl.BlockSpec((NEURONS_OUT, 1), lambda i: (0, 0)),
            ],
            # lane-dense output tile
            out_specs=pl.BlockSpec((NEURONS_OUT, tile_b), lambda i: (0, i)),
        ),
        compiler_params=pltpu.CompilerParams(
            dimension_semantics=("parallel",)),
    )(x_t, w_in_pass, b_in, w_h_pass, b_h, w_out_pass, b_out)

    # (neurons_out, b_pad) -> (B, neurons_out); trivial since neurons_out == 1
    return out_t.T[:batch]


# -------------------------- deterministic init ------------------------------
def init_params(key):
    """PyTorch-Linear-style uniform(-1/sqrt(fan_in), 1/sqrt(fan_in)) init."""
    keys = jax.random.split(key, 6)

    def uni(k, shape, fan_in):
        bound = 1.0 / jnp.sqrt(jnp.float32(fan_in))
        return jax.random.uniform(k, shape, jnp.float32, -bound, bound)

    w_in = uni(keys[0], (N_UNITS, N_INPUTS), N_INPUTS)
    b_in = uni(keys[1], (N_UNITS, 1), N_INPUTS)
    w_h = uni(keys[2], (N_LAYERS, N_UNITS, N_UNITS), N_UNITS)
    b_h = uni(keys[3], (N_LAYERS, N_UNITS, 1), N_UNITS)
    w_out = uni(keys[4], (NEURONS_OUT, N_UNITS), N_UNITS)
    b_out = uni(keys[5], (NEURONS_OUT, 1), N_UNITS)
    return (w_in, b_in, w_h, b_h, w_out, b_out)


# ---------------------------- pure-JAX reference -----------------------------
def mlp_ode_ref(x, params):
    """Exactly torch's x @ W.T + b chain, f32, in the (B, features) layout."""
    w_in, b_in, w_h, b_h, w_out, b_out = params
    h = x @ w_in.T + b_in[:, 0]
    for i in range(N_LAYERS):
        h = _act(h)
        h = h @ w_h[i].T + b_h[i, :, 0]
    h = _act(h)
    return h @ w_out.T + b_out[:, 0]


if __name__ == "__main__":
    key = jax.random.PRNGKey(0)
    k_x, k_p = jax.random.split(key)

    # Small batch, not a multiple of 128 -> exercises the pad-and-slice path
    # and (after padding to 256) a 2-step parallel grid.
    B = 200
    x = jax.random.normal(k_x, (B, N_INPUTS), jnp.float32)
    params = init_params(k_p)

    ref = mlp_ode_ref(x, params)

    # 1) exact mode (f32 MXU + f32 elementwise): validates layout/indexing/bias
    out_f32 = jax.block_until_ready(
        mlp_ode_forward(x, params, bf16_matmul=False, bf16_eltwise=False))
    assert out_f32.shape == (B, NEURONS_OUT)
    assert jnp.allclose(out_f32, ref, atol=1e-5, rtol=1e-5), "f32 kernel mismatch"

    # 2) optimized mode (bf16 MXU operands; bf16 tanh auto-enabled on v6e/v7x)
    out = jax.block_until_ready(mlp_ode_forward(x, params))
    assert out.shape == (B, NEURONS_OUT)
    assert jnp.allclose(out, ref, atol=5e-2, rtol=5e-2), "bf16 kernel mismatch"

    print("KERNEL_OK")
</pallas_src>

<mosaic_0001>
module attributes {stable_mosaic.version = 11 : i64} {
  func.func @mlp_ode_kernel(%arg0: i32, %arg1: memref<2x128xf32, #tpu.memory_space<vmem>>, %arg2: memref<32x2xf32, #tpu.memory_space<vmem>>, %arg3: memref<32x1xf32, #tpu.memory_space<vmem>>, %arg4: memref<3x32x32xf32, #tpu.memory_space<vmem>>, %arg5: memref<3x32x1xf32, #tpu.memory_space<vmem>>, %arg6: memref<32x1xf32, #tpu.memory_space<vmem>>, %arg7: memref<1x1xf32, #tpu.memory_space<vmem>>, %arg8: memref<1x128xf32, #tpu.memory_space<vmem>>) attributes {dimension_semantics = [#tpu.dimension_semantics<parallel>], iteration_bounds = array<i64: 2>, scalar_prefetch = 0 : i64, scratch_operands = 0 : i64, tpu.core_type = #tpu.core_type<tc>, window_params = [{transform_indices = @transform_0, window_bounds = array<i64: 2, 128>}, {pipeline_mode = #tpu.pipeline_mode<synchronous>, transform_indices = @transform_1, window_bounds = array<i64: 32, 2>}, {pipeline_mode = #tpu.pipeline_mode<synchronous>, transform_indices = @transform_2, window_bounds = array<i64: 32, 1>}, {pipeline_mode = #tpu.pipeline_mode<synchronous>, transform_indices = @transform_3, window_bounds = array<i64: 3, 32, 32>}, {pipeline_mode = #tpu.pipeline_mode<synchronous>, transform_indices = @transform_4, window_bounds = array<i64: 3, 32, 1>}, {pipeline_mode = #tpu.pipeline_mode<synchronous>, transform_indices = @transform_5, window_bounds = array<i64: 32, 1>}, {pipeline_mode = #tpu.pipeline_mode<synchronous>, transform_indices = @transform_6, window_bounds = array<i64: 1, 1>}, {transform_indices = @transform_7, window_bounds = array<i64: 1, 128>}]} {
    %c0 = arith.constant 0 : index
    %c0_0 = arith.constant 0 : index
    %0 = vector.load %arg1[%c0, %c0_0] : memref<2x128xf32, #tpu.memory_space<vmem>>, vector<2x128xf32>
    %c0_1 = arith.constant 0 : index
    %c0_2 = arith.constant 0 : index
    %1 = vector.load %arg2[%c0_1, %c0_2] : memref<32x2xf32, #tpu.memory_space<vmem>>, vector<32x2xf32>
    %c0_3 = arith.constant 0 : index
    %c0_4 = arith.constant 0 : index
    %2 = vector.load %arg3[%c0_3, %c0_4] : memref<32x1xf32, #tpu.memory_space<vmem>>, vector<32x1xf32>
    %3 = vector.extract_strided_slice %1 {offsets = [0, 0], sizes = [32, 1], strides = [1, 1]} : vector<32x2xf32> to vector<32x1xf32>
    %4 = vector.extract_strided_slice %0 {offsets = [0, 0], sizes = [1, 128], strides = [1, 1]} : vector<2x128xf32> to vector<1x128xf32>
    %5 = vector.broadcast %3 : vector<32x1xf32> to vector<32x128xf32>
    %6 = vector.broadcast %4 : vector<1x128xf32> to vector<32x128xf32>
    %7 = arith.mulf %5, %6 : vector<32x128xf32>
    %8 = vector.broadcast %2 : vector<32x1xf32> to vector<32x128xf32>
    %9 = arith.addf %8, %7 : vector<32x128xf32>
    %10 = vector.extract_strided_slice %1 {offsets = [0, 1], sizes = [32, 1], strides = [1, 1]} : vector<32x2xf32> to vector<32x1xf32>
    %11 = vector.extract_strided_slice %0 {offsets = [1, 0], sizes = [1, 128], strides = [1, 1]} : vector<2x128xf32> to vector<1x128xf32>
    %12 = vector.broadcast %10 : vector<32x1xf32> to vector<32x128xf32>
    %13 = vector.broadcast %11 : vector<1x128xf32> to vector<32x128xf32>
    %14 = arith.mulf %12, %13 : vector<32x128xf32>
    %15 = arith.addf %9, %14 : vector<32x128xf32>
    %16 = math.tanh %15 : vector<32x128xf32>
    %c0_5 = arith.constant 0 : index
    %c0_6 = arith.constant 0 : index
    %c0_7 = arith.constant 0 : index
    %17 = vector.load %arg4[%c0_5, %c0_6, %c0_7] : memref<3x32x32xf32, #tpu.memory_space<vmem>>, vector<1x32x32xf32>
    %18 = vector.shape_cast %17 : vector<1x32x32xf32> to vector<32x32xf32>
    %cst = arith.constant dense<0.000000e+00> : vector<32x128xf32>
    %19 = tpu.matmul %18, %16, %cst {dimension_numbers = #tpu.dot_dimension_numbers<[1], [0], [0], [1], [0, 0, 1, 1], [], []>} : vector<32x32xf32>, vector<32x128xf32>, vector<32x128xf32> -> vector<32x128xf32>
    %c0_8 = arith.constant 0 : index
    %c0_9 = arith.constant 0 : index
    %c0_10 = arith.constant 0 : index
    %20 = vector.load %arg5[%c0_8, %c0_9, %c0_10] : memref<3x32x1xf32, #tpu.memory_space<vmem>>, vector<1x32x1xf32>
    %21 = vector.shape_cast %20 : vector<1x32x1xf32> to vector<32x1xf32>
    %22 = vector.broadcast %21 : vector<32x1xf32> to vector<32x128xf32>
    %23 = arith.addf %19, %22 : vector<32x128xf32>
    %24 = math.tanh %23 : vector<32x128xf32>
    %c1 = arith.constant 1 : index
    %c0_11 = arith.constant 0 : index
    %c0_12 = arith.constant 0 : index
    %25 = vector.load %arg4[%c1, %c0_11, %c0_12] : memref<3x32x32xf32, #tpu.memory_space<vmem>>, vector<1x32x32xf32>
    %26 = vector.shape_cast %25 : vector<1x32x32xf32> to vector<32x32xf32>
    %cst_13 = arith.constant dense<0.000000e+00> : vector<32x128xf32>
    %27 = tpu.matmul %26, %24, %cst_13 {dimension_numbers = #tpu.dot_dimension_numbers<[1], [0], [0], [1], [0, 0, 1, 1], [], []>} : vector<32x32xf32>, vector<32x128xf32>, vector<32x128xf32> -> vector<32x128xf32>
    %c1_14 = arith.constant 1 : index
    %c0_15 = arith.constant 0 : index
    %c0_16 = arith.constant 0 : index
    %28 = vector.load %arg5[%c1_14, %c0_15, %c0_16] : memref<3x32x1xf32, #tpu.memory_space<vmem>>, vector<1x32x1xf32>
    %29 = vector.shape_cast %28 : vector<1x32x1xf32> to vector<32x1xf32>
    %30 = vector.broadcast %29 : vector<32x1xf32> to vector<32x128xf32>
    %31 = arith.addf %27, %30 : vector<32x128xf32>
    %32 = math.tanh %31 : vector<32x128xf32>
    %c2 = arith.constant 2 : index
    %c0_17 = arith.constant 0 : index
    %c0_18 = arith.constant 0 : index
    %33 = vector.load %arg4[%c2, %c0_17, %c0_18] : memref<3x32x32xf32, #tpu.memory_space<vmem>>, vector<1x32x32xf32>
    %34 = vector.shape_cast %33 : vector<1x32x32xf32> to vector<32x32xf32>
    %cst_19 = arith.constant dense<0.000000e+00> : vector<32x128xf32>
    %35 = tpu.matmul %34, %32, %cst_19 {dimension_numbers = #tpu.dot_dimension_numbers<[1], [0], [0], [1], [0, 0, 1, 1], [], []>} : vector<32x32xf32>, vector<32x128xf32>, vector<32x128xf32> -> vector<32x128xf32>
    %c2_20 = arith.constant 2 : index
    %c0_21 = arith.constant 0 : index
    %c0_22 = arith.constant 0 : index
    %36 = vector.load %arg5[%c2_20, %c0_21, %c0_22] : memref<3x32x1xf32, #tpu.memory_space<vmem>>, vector<1x32x1xf32>
    %37 = vector.shape_cast %36 : vector<1x32x1xf32> to vector<32x1xf32>
    %38 = vector.broadcast %37 : vector<32x1xf32> to vector<32x128xf32>
    %39 = arith.addf %35, %38 : vector<32x128xf32>
    %40 = math.tanh %39 : vector<32x128xf32>
    %c0_23 = arith.constant 0 : index
    %c0_24 = arith.constant 0 : index
    %41 = vector.load %arg6[%c0_23, %c0_24] : memref<32x1xf32, #tpu.memory_space<vmem>>, vector<32x1xf32>
    %42 = vector.broadcast %41 : vector<32x1xf32> to vector<32x128xf32>
    %43 = arith.mulf %42, %40 : vector<32x128xf32>
    %cst_25 = arith.constant dense<0.000000e+00> : vector<128xf32>
    %44 = vector.multi_reduction <add>, %43, %cst_25 [0] : vector<32x128xf32> to vector<128xf32>
    %45 = vector.shape_cast %44 : vector<128xf32> to vector<1x128xf32>
    %c0_26 = arith.constant 0 : index
    %c0_27 = arith.constant 0 : index
    %46 = vector.load %arg7[%c0_26, %c0_27] : memref<1x1xf32, #tpu.memory_space<vmem>>, vector<1x1xf32>
    %47 = vector.broadcast %46 : vector<1x1xf32> to vector<1x128xf32>
    %48 = arith.addf %45, %47 : vector<1x128xf32>
    %c0_28 = arith.constant 0 : index
    %c0_29 = arith.constant 0 : index
    %49 = vector.load %arg8[%c0_28, %c0_29] : memref<1x128xf32, #tpu.memory_space<vmem>>, vector<1x128xf32>
    tpu.vector_store %arg8[%c0_28, %c0_29], %48 {strides = array<i32>} : memref<1x128xf32, #tpu.memory_space<vmem>>, vector<1x128xf32>,
    return
  }
  func.func @transform_0(%arg0: i32) -> (i32, i32) {
    %c0_i32 = arith.constant 0 : i32
    %c0_i32_0 = arith.constant 0 : i32
    return %c0_i32, %arg0 : i32, i32
  }
  func.func @transform_1(%arg0: i32) -> (i32, i32) {
    %c0_i32 = arith.constant 0 : i32
    %c0_i32_0 = arith.constant 0 : i32
    %c0_i32_1 = arith.constant 0 : i32
    return %c0_i32, %c0_i32_0 : i32, i32
  }
  func.func @transform_2(%arg0: i32) -> (i32, i32) {
    %c0_i32 = arith.constant 0 : i32
    %c0_i32_0 = arith.constant 0 : i32
    %c0_i32_1 = arith.constant 0 : i32
    return %c0_i32, %c0_i32_0 : i32, i32
  }
  func.func @transform_3(%arg0: i32) -> (i32, i32, i32) {
    %c0_i32 = arith.constant 0 : i32
    %c0_i32_0 = arith.constant 0 : i32
    %c0_i32_1 = arith.constant 0 : i32
    %c0_i32_2 = arith.constant 0 : i32
    return %c0_i32, %c0_i32_0, %c0_i32_1 : i32, i32, i32
  }
  func.func @transform_4(%arg0: i32) -> (i32, i32, i32) {
    %c0_i32 = arith.constant 0 : i32
    %c0_i32_0 = arith.constant 0 : i32
    %c0_i32_1 = arith.constant 0 : i32
    %c0_i32_2 = arith.constant 0 : i32
    return %c0_i32, %c0_i32_0, %c0_i32_1 : i32, i32, i32
  }
  func.func @transform_5(%arg0: i32) -> (i32, i32) {
    %c0_i32 = arith.constant 0 : i32
    %c0_i32_0 = arith.constant 0 : i32
    %c0_i32_1 = arith.constant 0 : i32
    return %c0_i32, %c0_i32_0 : i32, i32
  }
  func.func @transform_6(%arg0: i32) -> (i32, i32) {
    %c0_i32 = arith.constant 0 : i32
    %c0_i32_0 = arith.constant 0 : i32
    %c0_i32_1 = arith.constant 0 : i32
    return %c0_i32, %c0_i32_0 : i32, i32
  }
  func.func @transform_7(%arg0: i32) -> (i32, i32) {
    %c0_i32 = arith.constant 0 : i32
    %c0_i32_0 = arith.constant 0 : i32
    return %c0_i32, %arg0 : i32, i32
  }
}

</mosaic_0001>

<llo_original>
// kernel: tpu_custom_call.1
$region0: #{tpu_custom_call.1}
  #allocation0 [shape = 'u32[]', space=smem, size = 0x4, offset = 0x4, fixed_abs, tag = 'smem constant byte address 0x4 - core index']
  #allocation1 [shape = 'u32[144,128]{1,0:T(1,128)}', space=vmem, size = 0x12000, scoped, tag = 'internal scratch']
  #allocation2 [shape = 'f32[1,1]{1,0:T(1,128)S(1)}', space=vmem, size = 0x200, scoped, tag = 'scoped memory for tpu_custom_call.1']
  %s0 = inlined_call_operand.vmem [shape: f32[2,256], index: 0, kind: input, shape index: {}]
  %s1 = inlined_call_operand.vmem [shape: f32[32,2], index: 1, kind: input, shape index: {}]
  %s2 = inlined_call_operand.vmem [shape: f32[32,1], index: 2, kind: input, shape index: {}]
  %s3 = inlined_call_operand.vmem [shape: f32[3,32,32], index: 3, kind: input, shape index: {}]
  %s4 = inlined_call_operand.vmem [shape: f32[3,32,1], index: 4, kind: input, shape index: {}]
  %s5 = inlined_call_operand.vmem [shape: f32[32,1], index: 5, kind: input, shape index: {}]
  %s6 = inlined_call_operand.<no memory space> [shape: f32[1,1], index: 6, kind: input, shape index: {}]
  %s7 = inlined_call_operand.hbm [shape: f32[1,256], index: 7, kind: output, shape index: {}]
  %s8 = sld [smem:[#allocation0]]
  $region61: #{tpu_custom_call.1} parent=0
    _
  %s10 = ssub.s32 1, %s8
  %s11 = scalar_select 0, %s10, %s8
  %v12 = vstv %s6
  %13 = vst [vmem:[#allocation2] sm:$0x1] %v12
  $region1: #{tpu_custom_call.1} parent=0
    #allocation3 [shape = 'u8[1024]{0}', space=vmem, size = 0x400, scoped, tag = 'output window, operand 0']
    #allocation4 [shape = 's32[2]{0}', space=sflag, size = 0x8, scoped, tag = 'scoped memory for tpu_custom_call.1']
    %14 = vsyncpa [#allocation4], 0
    %s15 = scalar_lea.sflag [#allocation4], 1
    %16 = vsyncpa %s15, 0
    loop: start=0, step=1, limit=4
    $region2: #{tpu_custom_call.1} parent=1 // loop_pre_header
      _
    $region3: #{tpu_custom_call.1} parent=1 // loop_header
      %s18 = sphi 0, %s22
      %p19 = scmp.ge.s32.totalorder %s18, 4
      %s28 = sphi 0, %s30
      %s31 = sphi 0, %s28
      %s32 = sphi 0, %s31
      %s48 = sphi 0, %s32
      %s52 = sphi 0, %s52
      %s54 = sphi 0, %s52
      %s55 = sphi 0, %s54
      %s69 = sphi 0, %s55
      %s73 = sphi 0, %s73
      %s75 = sphi 0, %s73
      %s76 = sphi 0, %s75
      %s90 = sphi 0, %s76
      %s94 = sphi 0, %s94
      %s96 = sphi 0, %s94
      %s97 = sphi 0, %s96
      %s111 = sphi 0, %s97
      %s115 = sphi 0, %s115
      %s117 = sphi 0, %s115
      %s118 = sphi 0, %s117
      %s132 = sphi 0, %s118
      %s136 = sphi 0, %s136
      %s138 = sphi 0, %s136
      %s139 = sphi 0, %s138
      %s153 = sphi 0, %s139
      %s157 = sphi 0, %s157
      %s159 = sphi 0, %s157
      %s160 = sphi 0, %s159
      %s174 = sphi 0, %s160
      %s180 = sphi 0, %s182
      %s183 = sphi 0, %s180
      %s184 = sphi 0, %s183
      %s200 = sphi 0, %s184
    $region4: #{tpu_custom_call.1} parent=1 // loop_header_branch
      %21 = sbr.rel (%p19) target = $region8
    $region5: #{tpu_custom_call.1} parent=1 // loop_body
      %s23 = ssub.s32 %s18, 1
      %s24 = ssub.s32 %s18, 2
      %s25 = sadd.s32 %s18, 1
      %s26 = ssub.s32 %s18, %s25
      %p27 = scmp.eq.s32.totalorder %s26, 0
      %s29 = sadd.s32 %s28, 1
      %s30 = scalar_select %p27, %s28, %s29
      %p33 = pneg %p27
      %p34 = scmp.eq.s32.totalorder %s18, 1
      %p35 = por %p33, %p34
      %p36 = scmp.ne.s32.totalorder %s28, %s31
      %p37 = scmp.eq.s32.totalorder %s18, 0
      %p38 = por %p36, %p37
      %p39 = scmp.ne.s32.totalorder %s28, %s31
      %p40 = scmp.eq.s32.totalorder %s23, 1
      %p41 = por %p39, %p40
      %p42 = scmp.ne.s32.totalorder %s31, %s32
      %p43 = scmp.eq.s32.totalorder %s23, 0
      %p44 = por %p42, %p43
      %p45 = scmp.ne.s32.totalorder %s31, %s32
      %p46 = scmp.eq.s32.totalorder %s24, 1
      %p47 = por %p45, %p46
      %p49 = scmp.ne.s32.totalorder %s32, %s48
      %p50 = scmp.eq.s32.totalorder %s24, 0
      %p51 = por %p49, %p50
      %s53 = sadd.s32 %s52, 1
      %p56 = scmp.eq.s32.totalorder %s18, 1
      %p57 = scmp.ne.s32.totalorder %s52, %s54
      %p58 = scmp.eq.s32.totalorder %s18, 0
      %p59 = por %p57, %p58
      %p60 = scmp.ne.s32.totalorder %s52, %s54
      %p61 = scmp.eq.s32.totalorder %s23, 1
      %p62 = por %p60, %p61
      %p63 = scmp.ne.s32.totalorder %s54, %s55
      %p64 = scmp.eq.s32.totalorder %s23, 0
      %p65 = por %p63, %p64
      %p66 = scmp.ne.s32.totalorder %s54, %s55
      %p67 = scmp.eq.s32.totalorder %s24, 1
      %p68 = por %p66, %p67
      %p70 = scmp.ne.s32.totalorder %s55, %s69
      %p71 = scmp.eq.s32.totalorder %s24, 0
      %p72 = por %p70, %p71
      %s74 = sadd.s32 %s73, 1
      %p77 = scmp.eq.s32.totalorder %s18, 1
      %p78 = scmp.ne.s32.totalorder %s73, %s75
      %p79 = scmp.eq.s32.totalorder %s18, 0
      %p80 = por %p78, %p79
      %p81 = scmp.ne.s32.totalorder %s73, %s75
      %p82 = scmp.eq.s32.totalorder %s23, 1
      %p83 = por %p81, %p82
      %p84 = scmp.ne.s32.totalorder %s75, %s76
      %p85 = scmp.eq.s32.totalorder %s23, 0
      %p86 = por %p84, %p85
      %p87 = scmp.ne.s32.totalorder %s75, %s76
      %p88 = scmp.eq.s32.totalorder %s24, 1
      %p89 = por %p87, %p88
      %p91 = scmp.ne.s32.totalorder %s76, %s90
      %p92 = scmp.eq.s32.totalorder %s24, 0
      %p93 = por %p91, %p92
      %s95 = sadd.s32 %s94, 1
      %p98 = scmp.eq.s32.totalorder %s18, 1
      %p99 = scmp.ne.s32.totalorder %s94, %s96
      %p100 = scmp.eq.s32.totalorder %s18, 0
      %p101 = por %p99, %p100
      %p102 = scmp.ne.s32.totalorder %s94, %s96
      %p103 = scmp.eq.s32.totalorder %s23, 1
      %p104 = por %p102, %p103
      %p105 = scmp.ne.s32.totalorder %s96, %s97
      %p106 = scmp.eq.s32.totalorder %s23, 0
      %p107 = por %p105, %p106
      %p108 = scmp.ne.s32.totalorder %s96, %s97
      %p109 = scmp.eq.s32.totalorder %s24, 1
      %p110 = por %p108, %p109
      %p112 = scmp.ne.s32.totalorder %s97, %s111
      %p113 = scmp.eq.s32.totalorder %s24, 0
      %p114 = por %p112, %p113
      %s116 = sadd.s32 %s115, 1
      %p119 = scmp.eq.s32.totalorder %s18, 1
      %p120 = scmp.ne.s32.totalorder %s115, %s117
      %p121 = scmp.eq.s32.totalorder %s18, 0
      %p122 = por %p120, %p121
      %p123 = scmp.ne.s32.totalorder %s115, %s117
      %p124 = scmp.eq.s32.totalorder %s23, 1
      %p125 = por %p123, %p124
      %p126 = scmp.ne.s32.totalorder %s117, %s118
      %p127 = scmp.eq.s32.totalorder %s23, 0
      %p128 = por %p126, %p127
      %p129 = scmp.ne.s32.totalorder %s117, %s118
      %p130 = scmp.eq.s32.totalorder %s24, 1
      %p131 = por %p129, %p130
      %p133 = scmp.ne.s32.totalorder %s118, %s132
      %p134 = scmp.eq.s32.totalorder %s24, 0
      %p135 = por %p133, %p134
      %s137 = sadd.s32 %s136, 1
      %p140 = scmp.eq.s32.totalorder %s18, 1
      %p141 = scmp.ne.s32.totalorder %s136, %s138
      %p142 = scmp.eq.s32.totalorder %s18, 0
      %p143 = por %p141, %p142
      %p144 = scmp.ne.s32.totalorder %s136, %s138
      %p145 = scmp.eq.s32.totalorder %s23, 1
      %p146 = por %p144, %p145
      %p147 = scmp.ne.s32.totalorder %s138, %s139
      %p148 = scmp.eq.s32.totalorder %s23, 0
      %p149 = por %p147, %p148
      %p150 = scmp.ne.s32.totalorder %s138, %s139
      %p151 = scmp.eq.s32.totalorder %s24, 1
      %p152 = por %p150, %p151
      %p154 = scmp.ne.s32.totalorder %s139, %s153
      %p155 = scmp.eq.s32.totalorder %s24, 0
      %p156 = por %p154, %p155
      %s158 = sadd.s32 %s157, 1
      %p161 = scmp.eq.s32.totalorder %s18, 1
      %p162 = scmp.ne.s32.totalorder %s157, %s159
      %p163 = scmp.eq.s32.totalorder %s18, 0
      %p164 = por %p162, %p163
      %p165 = scmp.ne.s32.totalorder %s157, %s159
      %p166 = scmp.eq.s32.totalorder %s23, 1
      %p167 = por %p165, %p166
      %p168 = scmp.ne.s32.totalorder %s159, %s160
      %p169 = scmp.eq.s32.totalorder %s23, 0
      %p170 = por %p168, %p169
      %p171 = scmp.ne.s32.totalorder %s159, %s160
      %p172 = scmp.eq.s32.totalorder %s24, 1
      %p173 = por %p171, %p172
      %p175 = scmp.ne.s32.totalorder %s160, %s174
      %p176 = scmp.eq.s32.totalorder %s24, 0
      %p177 = por %p175, %p176
      %s178 = ssub.s32 %s18, %s25
      %p179 = scmp.eq.s32.totalorder %s178, 0
      %s181 = sadd.s32 %s180, 1
      %s182 = scalar_select %p179, %s180, %s181
      %p185 = pneg %p179
      %p186 = scmp.eq.s32.totalorder %s18, 1
      %p187 = por %p185, %p186
      %p188 = scmp.ne.s32.totalorder %s180, %s183
      %p189 = scmp.eq.s32.totalorder %s18, 0
      %p190 = por %p188, %p189
      %p191 = scmp.ne.s32.totalorder %s180, %s183
      %p192 = scmp.eq.s32.totalorder %s23, 1
      %p193 = por %p191, %p192
      %p194 = scmp.ne.s32.totalorder %s183, %s184
      %p195 = scmp.eq.s32.totalorder %s23, 0
      %p196 = por %p194, %p195
      %p197 = scmp.ne.s32.totalorder %s183, %s184
      %p198 = scmp.eq.s32.totalorder %s24, 1
      %p199 = por %p197, %p198
      %p201 = scmp.ne.s32.totalorder %s184, %s200
      %p202 = scmp.eq.s32.totalorder %s24, 0
      %p203 = por %p201, %p202
      %p204 = scmp.le.s32.totalorder 1, %s18
      %p205 = scmp.lt.s32.totalorder %s18, 3
      %p206 = pnand %p204, %p205
      %p207 = pneg %p206
      // Predicated region
      $region9: #{tpu_custom_call.1} parent=5 // pred_check
        _
      $region10: #{tpu_custom_call.1} parent=5 // pred_check_branch
        %209 = sbr.rel (%p206) target = $region12
      $region11: #{tpu_custom_call.1} parent=5 // pred_region
        %s210 = ssub.s32 %s18, 1
        // Predicated region
        $region13: #{tpu_custom_call.1} parent=11 // pred_check
          %p211 = pneg %p65
        $region14: #{tpu_custom_call.1} parent=11 // pred_check_branch
          %213 = sbr.rel (%p211) target = $region16
        $region15: #{tpu_custom_call.1} parent=11 // pred_region
          _
        $region16: #{tpu_custom_call.1} parent=11 // pred_fallthru
          _
        // Predicated region
        $region17: #{tpu_custom_call.1} parent=11 // pred_check
          %p214 = pneg %p86
        $region18: #{tpu_custom_call.1} parent=11 // pred_check_branch
          %216 = sbr.rel (%p214) target = $region20
        $region19: #{tpu_custom_call.1} parent=11 // pred_region
          _
        $region20: #{tpu_custom_call.1} parent=11 // pred_fallthru
          _
        // Predicated region
        $region21: #{tpu_custom_call.1} parent=11 // pred_check
          %p217 = pneg %p107
        $region22: #{tpu_custom_call.1} parent=11 // pred_check_branch
          %219 = sbr.rel (%p217) target = $region24
        $region23: #{tpu_custom_call.1} parent=11 // pred_region
          _
        $region24: #{tpu_custom_call.1} parent=11 // pred_fallthru
          _
        // Predicated region
        $region25: #{tpu_custom_call.1} parent=11 // pred_check
          %p220 = pneg %p128
        $region26: #{tpu_custom_call.1} parent=11 // pred_check_branch
          %222 = sbr.rel (%p220) target = $region28
        $region27: #{tpu_custom_call.1} parent=11 // pred_region
          _
        $region28: #{tpu_custom_call.1} parent=11 // pred_fallthru
          _
        // Predicated region
        $region29: #{tpu_custom_call.1} parent=11 // pred_check
          %p223 = pneg %p149
        $region30: #{tpu_custom_call.1} parent=11 // pred_check_branch
          %225 = sbr.rel (%p223) target = $region32
        $region31: #{tpu_custom_call.1} parent=11 // pred_region
          _
        $region32: #{tpu_custom_call.1} parent=11 // pred_fallthru
          _
        // Predicated region
        $region33: #{tpu_custom_call.1} parent=11 // pred_check
          %p226 = pneg %p170
        $region34: #{tpu_custom_call.1} parent=11 // pred_check_branch
          %228 = sbr.rel (%p226) target = $region36
        $region35: #{tpu_custom_call.1} parent=11 // pred_region
          _
        $region36: #{tpu_custom_call.1} parent=11 // pred_fallthru
          _
      $region12: #{tpu_custom_call.1} parent=5 // pred_fallthru
        _
      %p229 = scmp.lt.s32.totalorder %s18, 2
      // Predicated region
      $region37: #{tpu_custom_call.1} parent=5 // pred_check
        %p230 = pneg %p229
      $region38: #{tpu_custom_call.1} parent=5 // pred_check_branch
        %232 = sbr.rel (%p230) target = $region40
      $region39: #{tpu_custom_call.1} parent=5 // pred_region
        // Predicated region
        $region41: #{tpu_custom_call.1} parent=39 // pred_check
          %p233 = pneg %p38
        $region42: #{tpu_custom_call.1} parent=39 // pred_check_branch
          %235 = sbr.rel (%p233) target = $region44
        $region43: #{tpu_custom_call.1} parent=39 // pred_region
          %p236 = scmp.lt.s32.totalorder %s18, 1
          %s237 = scalar_select %p236, %s18, 1
          %s238 = smul.addr %s237, 2
          %s239 = scalar_lea.vmem %s0, %s238
        $region44: #{tpu_custom_call.1} parent=39 // pred_fallthru
          _
      $region40: #{tpu_custom_call.1} parent=5 // pred_fallthru
        _
      %p240 = scmp.le.s32.totalorder 1, %s18
      %p241 = scmp.lt.s32.totalorder %s18, 3
      %p242 = pnand %p240, %p241
      %p243 = pneg %p242
      // Predicated region
      $region45: #{tpu_custom_call.1} parent=5 // pred_check
        _
      $region46: #{tpu_custom_call.1} parent=5 // pred_check_branch
        %245 = sbr.rel (%p242) target = $region48
      $region47: #{tpu_custom_call.1} parent=5 // pred_region
        %s246 = ssub.s32 %s18, 1
        %p247 = scmp.lt.s32.totalorder %s23, 1
        %s248 = scalar_select %p247, %s23, 1
        %s249 = smul.addr %s248, 2
        %s250 = scalar_lea.vmem %s0, %s249
        %p251 = pneg %p44
        %p252 = pneg %p41
        %p253 = pneg %p65
        %p254 = pneg %p62
        %p255 = pneg %p86
        %p256 = pneg %p83
        %p257 = pneg %p107
        %p258 = pneg %p104
        %p259 = pneg %p128
        %p260 = pneg %p125
        %p261 = pneg %p149
        %p262 = pneg %p146
        %p263 = pneg %p170
        %p264 = pneg %p167
        %p265 = pneg %p196
        %p266 = pneg %p193
        %s267 = sand.u32 %s183, 1
        %s268 = scalar_lea.sflag [#allocation4], %s267
        %s269 = sand.u32 %s183, 1
        %s270 = scalar_lea.vmem [#allocation3], %s269
        %p271 = scmp.lt.s32.totalorder %s23, 1
        %s272 = scalar_select %p271, %s23, 1
        %s273 = smul.addr %s272, 2
        %s274 = scalar_lea.vmem %s0, %s273
        %v275 = vld [vmem:[%s274] sm:$0x3]
        %v276 = vld [vmem:[%s1] sm:$0xff]
        %v277 = vld [vmem:[%s1 + $0x8] sm:$0xff]
        %v278 = vld [vmem:[%s1 + $0x10] sm:$0xff]
        %v279 = vld [vmem:[%s1 + $0x18] sm:$0xff]
        %v280 = vld [vmem:[%s2] sm:$0xff]
        %v281 = vld [vmem:[%s2 + $0x8] sm:$0xff]
        %v282 = vld [vmem:[%s2 + $0x10] sm:$0xff]
        %v283 = vld [vmem:[%s2 + $0x18] sm:$0xff]
        %285 = vset.pattern.permute.xlu0 0
        %286 = vperm.xlu0 %285, %v276
        %v287 = vpop.permute.xlu0 %286
        %290 = vset.pattern.permute.xlu0 0
        %291 = vperm.xlu0 %290, %v277
        %v292 = vpop.permute.xlu0 %291
        %295 = vset.pattern.permute.xlu0 0
        %296 = vperm.xlu0 %295, %v278
        %v297 = vpop.permute.xlu0 %296
        %300 = vset.pattern.permute.xlu0 0
        %301 = vperm.xlu0 %300, %v279
        %v302 = vpop.permute.xlu0 %301
        %v304 = vlaneseq
        %v305 = vshrl.u32 %v304, 7
        %v306 = vsub.s32 0, %v305
        %v307 = vrot.slane %v275, %v306
        %v308 = vmul.f32 %v287, %v307
        %v309 = vmul.f32 %v292, %v307
        %v310 = vmul.f32 %v297, %v307
        %v311 = vmul.f32 %v302, %v307
        %313 = vset.pattern.permute.xlu0 0
        %314 = vperm.xlu0 %313, %v280
        %v315 = vpop.permute.xlu0 %314
        %318 = vset.pattern.permute.xlu0 0
        %319 = vperm.xlu0 %318, %v281
        %v320 = vpop.permute.xlu0 %319
        %323 = vset.pattern.permute.xlu0 0
        %324 = vperm.xlu0 %323, %v282
        %v325 = vpop.permute.xlu0 %324
        %328 = vset.pattern.permute.xlu0 0
        %329 = vperm.xlu0 %328, %v283
        %v330 = vpop.permute.xlu0 %329
        %v332 = vadd.f32 %v315, %v308
        %v333 = vadd.f32 %v320, %v309
        %v334 = vadd.f32 %v325, %v310
        %v335 = vadd.f32 %v330, %v311
        %336 = vset.pattern.permute.xlu0 1
        %337 = vperm.xlu0 %336, %v276
        %v338 = vpop.permute.xlu0 %337
        %340 = vset.pattern.permute.xlu0 1
        %341 = vperm.xlu0 %340, %v277
        %v342 = vpop.permute.xlu0 %341
        %344 = vset.pattern.permute.xlu0 1
        %345 = vperm.xlu0 %344, %v278
        %v346 = vpop.permute.xlu0 %345
        %348 = vset.pattern.permute.xlu0 1
        %349 = vperm.xlu0 %348, %v279
        %v350 = vpop.permute.xlu0 %349
        %v352 = vlaneseq
        %v353 = vshrl.u32 %v352, 7
        %v354 = vsub.s32 1, %v353
        %v355 = vrot.slane %v275, %v354
        %v356 = vmul.f32 %v338, %v355
        %v357 = vmul.f32 %v342, %v355
        %v358 = vmul.f32 %v346, %v355
        %v359 = vmul.f32 %v350, %v355
        %v360 = vadd.f32 %v332, %v356
        %v361 = vadd.f32 %v333, %v357
        %v362 = vadd.f32 %v334, %v358
        %v363 = vadd.f32 %v335, %v359
        %v364 = vtanh.pop %v360
        %v365 = vtanh.pop %v361
        %v366 = vtanh.pop %v362
        %v367 = vtanh.pop %v363
        %v368 = vld [vmem:[%s3] sm:$0xff]
        %v369 = vld [vmem:[%s3 + $0x8] sm:$0xff]
        %v370 = vld [vmem:[%s3 + $0x10] sm:$0xff]
        %v371 = vld [vmem:[%s3 + $0x18] sm:$0xff]
        %v372 = vld [vmem:[%s4] sm:$0xff]
        %v373 = vld [vmem:[%s4 + $0x8] sm:$0xff]
        %v374 = vld [vmem:[%s4 + $0x10] sm:$0xff]
        %v375 = vld [vmem:[%s4 + $0x18] sm:$0xff]
        %377 = vset.pattern.permute.xlu0 0
        %378 = vperm.xlu0 %377, %v372
        %v379 = vpop.permute.xlu0 %378
        %382 = vset.pattern.permute.xlu0 0
        %383 = vperm.xlu0 %382, %v373
        %v384 = vpop.permute.xlu0 %383
        %387 = vset.pattern.permute.xlu0 0
        %388 = vperm.xlu0 %387, %v374
        %v389 = vpop.permute.xlu0 %388
        %392 = vset.pattern.permute.xlu0 0
        %393 = vperm.xlu0 %392, %v375
        %v394 = vpop.permute.xlu0 %393
        %vm396 = vcmask 261120
        %v398 = vsel %vm396, %v368, 0
        %v401 = vsel %vm396, %v369, 0
        %v404 = vsel %vm396, %v370, 0
        %v407 = vsel %vm396, %v371, 0
        %409 = vmatprep.subr.mxu0 0.0
        %410 = vmatpush1.msra.mxu0 %v364
        %411 = vmatprep.subr.mxu0 0.0
        %412 = vmatpush1.msra.mxu0 %v365
        %413 = vmatprep.subr.mxu0 0.0
        %414 = vmatpush1.msra.mxu0 %v366
        %415 = vmatprep.subr.mxu0 0.0
        %416 = vmatpush1.msra.mxu0 %v367
        %417 = vmatprep.subr.mxu0 0.0
        %418 = vmatpush1.msra.mxu0 0.0
        %419 = vmatprep.subr.mxu0 0.0
        %420 = vmatpush1.msra.mxu0 0.0
        %421 = vmatprep.subr.mxu0 0.0
        %422 = vmatpush1.msra.mxu0 0.0
        %423 = vmatprep.subr.mxu0 0.0
        %424 = vmatpush1.msra.mxu0 0.0
        %425 = vmatprep.subr.mxu0 0.0
        %426 = vmatpush1.msra.mxu0 0.0
        %427 = vmatprep.subr.mxu0 0.0
        %428 = vmatpush1.msra.mxu0 0.0
        %429 = vmatprep.subr.mxu0 0.0
        %430 = vmatpush1.msra.mxu0 0.0
        %431 = vmatprep.subr.mxu0 0.0
        %432 = vmatpush1.msra.mxu0 0.0
        %433 = vmatprep.subr.mxu0 0.0
        %434 = vmatpush1.msra.mxu0 0.0
        %435 = vmatprep.subr.mxu0 0.0
        %436 = vmatpush1.msra.mxu0 0.0
        %437 = vmatprep.subr.mxu0 0.0
        %438 = vmatpush1.msra.mxu0 0.0
        %439 = vmatprep.subr.mxu0 0.0
        %440 = vmatpush1.msra.mxu0 0.0
        %441 = vmatprep.subr.mxu0 0.0
        %442 = vmatpush1.msra.mxu0 0.0
        %443 = vmatprep.subr.mxu0 0.0
        %444 = vmatpush1.msra.mxu0 0.0
        %445 = vmatprep.subr.mxu0 0.0
        %446 = vmatpush1.msra.mxu0 0.0
        %447 = vmatprep.subr.mxu0 0.0
        %448 = vmatpush1.msra.mxu0 0.0
        %449 = vmatprep.subr.mxu0 0.0
        %450 = vmatpush1.msra.mxu0 0.0
        %451 = vmatprep.subr.mxu0 0.0
        %452 = vmatpush1.msra.mxu0 0.0
        %453 = vmatprep.subr.mxu0 0.0
        %454 = vmatpush1.msra.mxu0 0.0
        %455 = vmatprep.subr.mxu0 0.0
        %456 = vmatpush1.msra.mxu0 0.0
        %457 = vmatprep.subr.mxu0 0.0
        %458 = vmatpush1.msra.mxu0 0.0
        %459 = vmatprep.subr.mxu0 0.0
        %460 = vmatpush1.msra.mxu0 0.0
        %461 = vmatprep.subr.mxu0 0.0
        %462 = vmatpush1.msra.mxu0 0.0
        %463 = vmatprep.subr.mxu0 0.0
        %464 = vmatpush1.msra.mxu0 0.0
        %465 = vmatprep.subr.mxu0 0.0
        %466 = vmatpush1.msra.mxu0 0.0
        %467 = vmatprep.subr.mxu0 0.0
        %468 = vmatpush1.msra.mxu0 0.0
        %469 = vmatprep.subr.mxu0 0.0
        %470 = vmatpush1.msra.mxu0 0.0
        %471 = vmatprep.subr.mxu0 0.0
        %472 = vmatpush1.msra.mxu0 0.0
        %473 = vmatprep.mubr.f32.mxu0 0.0
        %474 = vmatmul.mubr.f32.gmra.mrb[0].mxu0 %v398
        %v475 = vpop.f32.mrb[0].mxu0
        %v476 = vadd.f32 %v379, %v475
        %v477 = vpop.f32.mrb[0].mxu0
        %478 = vmatprep.mubr.f32.mxu0 0.0
        %479 = vmatmul.mubr.f32.gmra.mrb[0].mxu0 %v401
        %v480 = vpop.f32.mrb[0].mxu0
        %v481 = vadd.f32 %v384, %v480
        %v482 = vpop.f32.mrb[0].mxu0
        %483 = vmatprep.mubr.f32.mxu0 0.0
        %484 = vmatmul.mubr.f32.gmra.mrb[0].mxu0 %v404
        %v485 = vpop.f32.mrb[0].mxu0
        %v486 = vadd.f32 %v389, %v485
        %v487 = vpop.f32.mrb[0].mxu0
        %488 = vmatprep.mubr.f32.mxu0 0.0
        %489 = vmatmul.mubr.f32.gmra.mrb[0].mxu0 %v407
        %v490 = vpop.f32.mrb[0].mxu0
        %v491 = vadd.f32 %v394, %v490
        %v492 = vpop.f32.mrb[0].mxu0
        %493 = vdwg.mxu0
        %v494 = vtanh.pop %v476
        %v495 = vtanh.pop %v481
        %v496 = vtanh.pop %v486
        %v497 = vtanh.pop %v491
        %s498 = scalar_lea.vmem %s3, 32
        %v499 = vld [vmem:[%s498] sm:$0xff]
        %v500 = vld [vmem:[%s498 + $0x8] sm:$0xff]
        %v501 = vld [vmem:[%s498 + $0x10] sm:$0xff]
        %v502 = vld [vmem:[%s498 + $0x18] sm:$0xff]
        %s503 = scalar_lea.vmem %s4, 32
        %v504 = vld [vmem:[%s503] sm:$0xff]
        %v505 = vld [vmem:[%s503 + $0x8] sm:$0xff]
        %v506 = vld [vmem:[%s503 + $0x10] sm:$0xff]
        %v507 = vld [vmem:[%s503 + $0x18] sm:$0xff]
        %509 = vset.pattern.permute.xlu0 0
        %510 = vperm.xlu0 %509, %v504
        %v511 = vpop.permute.xlu0 %510
        %514 = vset.pattern.permute.xlu0 0
        %515 = vperm.xlu0 %514, %v505
        %v516 = vpop.permute.xlu0 %515
        %519 = vset.pattern.permute.xlu0 0
        %520 = vperm.xlu0 %519, %v506
        %v521 = vpop.permute.xlu0 %520
        %524 = vset.pattern.permute.xlu0 0
        %525 = vperm.xlu0 %524, %v507
        %v526 = vpop.permute.xlu0 %525
        %v529 = vsel %vm396, %v499, 0
        %v532 = vsel %vm396, %v500, 0
        %v535 = vsel %vm396, %v501, 0
        %v538 = vsel %vm396, %v502, 0
        %540 = vmatprep.subr.mxu0 0.0
        %541 = vmatpush1.msra.mxu0 %v494
        %542 = vmatprep.subr.mxu0 0.0
        %543 = vmatpush1.msra.mxu0 %v495
        %544 = vmatprep.subr.mxu0 0.0
        %545 = vmatpush1.msra.mxu0 %v496
        %546 = vmatprep.subr.mxu0 0.0
        %547 = vmatpush1.msra.mxu0 %v497
        %548 = vmatprep.subr.mxu0 0.0
        %549 = vmatpush1.msra.mxu0 0.0
        %550 = vmatprep.subr.mxu0 0.0
        %551 = vmatpush1.msra.mxu0 0.0
        %552 = vmatprep.subr.mxu0 0.0
        %553 = vmatpush1.msra.mxu0 0.0
        %554 = vmatprep.subr.mxu0 0.0
        %555 = vmatpush1.msra.mxu0 0.0
        %556 = vmatprep.subr.mxu0 0.0
        %557 = vmatpush1.msra.mxu0 0.0
        %558 = vmatprep.subr.mxu0 0.0
        %559 = vmatpush1.msra.mxu0 0.0
        %560 = vmatprep.subr.mxu0 0.0
        %561 = vmatpush1.msra.mxu0 0.0
        %562 = vmatprep.subr.mxu0 0.0
        %563 = vmatpush1.msra.mxu0 0.0
        %564 = vmatprep.subr.mxu0 0.0
        %565 = vmatpush1.msra.mxu0 0.0
        %566 = vmatprep.subr.mxu0 0.0
        %567 = vmatpush1.msra.mxu0 0.0
        %568 = vmatprep.subr.mxu0 0.0
        %569 = vmatpush1.msra.mxu0 0.0
        %570 = vmatprep.subr.mxu0 0.0
        %571 = vmatpush1.msra.mxu0 0.0
        %572 = vmatprep.subr.mxu0 0.0
        %573 = vmatpush1.msra.mxu0 0.0
        %574 = vmatprep.subr.mxu0 0.0
        %575 = vmatpush1.msra.mxu0 0.0
        %576 = vmatprep.subr.mxu0 0.0
        %577 = vmatpush1.msra.mxu0 0.0
        %578 = vmatprep.subr.mxu0 0.0
        %579 = vmatpush1.msra.mxu0 0.0
        %580 = vmatprep.subr.mxu0 0.0
        %581 = vmatpush1.msra.mxu0 0.0
        %582 = vmatprep.subr.mxu0 0.0
        %583 = vmatpush1.msra.mxu0 0.0
        %584 = vmatprep.subr.mxu0 0.0
        %585 = vmatpush1.msra.mxu0 0.0
        %586 = vmatprep.subr.mxu0 0.0
        %587 = vmatpush1.msra.mxu0 0.0
        %588 = vmatprep.subr.mxu0 0.0
        %589 = vmatpush1.msra.mxu0 0.0
        %590 = vmatprep.subr.mxu0 0.0
        %591 = vmatpush1.msra.mxu0 0.0
        %592 = vmatprep.subr.mxu0 0.0
        %593 = vmatpush1.msra.mxu0 0.0
        %594 = vmatprep.subr.mxu0 0.0
        %595 = vmatpush1.msra.mxu0 0.0
        %596 = vmatprep.subr.mxu0 0.0
        %597 = vmatpush1.msra.mxu0 0.0
        %598 = vmatprep.subr.mxu0 0.0
        %599 = vmatpush1.msra.mxu0 0.0
        %600 = vmatprep.subr.mxu0 0.0
        %601 = vmatpush1.msra.mxu0 0.0
        %602 = vmatprep.subr.mxu0 0.0
        %603 = vmatpush1.msra.mxu0 0.0
        %604 = vmatprep.mubr.f32.mxu0 0.0
        %605 = vmatmul.mubr.f32.gmra.mrb[0].mxu0 %v529
        %v606 = vpop.f32.mrb[0].mxu0
        %v607 = vadd.f32 %v511, %v606
        %v608 = vpop.f32.mrb[0].mxu0
        %609 = vmatprep.mubr.f32.mxu0 0.0
        %610 = vmatmul.mubr.f32.gmra.mrb[0].mxu0 %v532
        %v611 = vpop.f32.mrb[0].mxu0
        %v612 = vadd.f32 %v516, %v611
        %v613 = vpop.f32.mrb[0].mxu0
        %614 = vmatprep.mubr.f32.mxu0 0.0
        %615 = vmatmul.mubr.f32.gmra.mrb[0].mxu0 %v535
        %v616 = vpop.f32.mrb[0].mxu0
        %v617 = vadd.f32 %v521, %v616
        %v618 = vpop.f32.mrb[0].mxu0
        %619 = vmatprep.mubr.f32.mxu0 0.0
        %620 = vmatmul.mubr.f32.gmra.mrb[0].mxu0 %v538
        %v621 = vpop.f32.mrb[0].mxu0
        %v622 = vadd.f32 %v526, %v621
        %v623 = vpop.f32.mrb[0].mxu0
        %624 = vdwg.mxu0
        %v625 = vtanh.pop %v607
        %v626 = vtanh.pop %v612
        %v627 = vtanh.pop %v617
        %v628 = vtanh.pop %v622
        %s629 = scalar_lea.vmem %s3, 64
        %v630 = vld [vmem:[%s629] sm:$0xff]
        %v631 = vld [vmem:[%s629 + $0x8] sm:$0xff]
        %v632 = vld [vmem:[%s629 + $0x10] sm:$0xff]
        %v633 = vld [vmem:[%s629 + $0x18] sm:$0xff]
        %s634 = scalar_lea.vmem %s4, 64
        %v635 = vld [vmem:[%s634] sm:$0xff]
        %v636 = vld [vmem:[%s634 + $0x8] sm:$0xff]
        %v637 = vld [vmem:[%s634 + $0x10] sm:$0xff]
        %v638 = vld [vmem:[%s634 + $0x18] sm:$0xff]
        %640 = vset.pattern.permute.xlu0 0
        %641 = vperm.xlu0 %640, %v635
        %v642 = vpop.permute.xlu0 %641
        %645 = vset.pattern.permute.xlu0 0
        %646 = vperm.xlu0 %645, %v636
        %v647 = vpop.permute.xlu0 %646
        %650 = vset.pattern.permute.xlu0 0
        %651 = vperm.xlu0 %650, %v637
        %v652 = vpop.permute.xlu0 %651
        %655 = vset.pattern.permute.xlu0 0
        %656 = vperm.xlu0 %655, %v638
        %v657 = vpop.permute.xlu0 %656
        %v660 = vsel %vm396, %v630, 0
        %v663 = vsel %vm396, %v631, 0
        %v666 = vsel %vm396, %v632, 0
        %v669 = vsel %vm396, %v633, 0
        %671 = vmatprep.subr.mxu0 0.0
        %672 = vmatpush1.msra.mxu0 %v625
        %673 = vmatprep.subr.mxu0 0.0
        %674 = vmatpush1.msra.mxu0 %v626
        %675 = vmatprep.subr.mxu0 0.0
        %676 = vmatpush1.msra.mxu0 %v627
        %677 = vmatprep.subr.mxu0 0.0
        %678 = vmatpush1.msra.mxu0 %v628
        %679 = vmatprep.subr.mxu0 0.0
        %680 = vmatpush1.msra.mxu0 0.0
        %681 = vmatprep.subr.mxu0 0.0
        %682 = vmatpush1.msra.mxu0 0.0
        %683 = vmatprep.subr.mxu0 0.0
        %684 = vmatpush1.msra.mxu0 0.0
        %685 = vmatprep.subr.mxu0 0.0
        %686 = vmatpush1.msra.mxu0 0.0
        %687 = vmatprep.subr.mxu0 0.0
        %688 = vmatpush1.msra.mxu0 0.0
        %689 = vmatprep.subr.mxu0 0.0
        %690 = vmatpush1.msra.mxu0 0.0
        %691 = vmatprep.subr.mxu0 0.0
        %692 = vmatpush1.msra.mxu0 0.0
        %693 = vmatprep.subr.mxu0 0.0
        %694 = vmatpush1.msra.mxu0 0.0
        %695 = vmatprep.subr.mxu0 0.0
        %696 = vmatpush1.msra.mxu0 0.0
        %697 = vmatprep.subr.mxu0 0.0
        %698 = vmatpush1.msra.mxu0 0.0
        %699 = vmatprep.subr.mxu0 0.0
        %700 = vmatpush1.msra.mxu0 0.0
        %701 = vmatprep.subr.mxu0 0.0
        %702 = vmatpush1.msra.mxu0 0.0
        %703 = vmatprep.subr.mxu0 0.0
        %704 = vmatpush1.msra.mxu0 0.0
        %705 = vmatprep.subr.mxu0 0.0
        %706 = vmatpush1.msra.mxu0 0.0
        %707 = vmatprep.subr.mxu0 0.0
        %708 = vmatpush1.msra.mxu0 0.0
        %709 = vmatprep.subr.mxu0 0.0
        %710 = vmatpush1.msra.mxu0 0.0
        %711 = vmatprep.subr.mxu0 0.0
        %712 = vmatpush1.msra.mxu0 0.0
        %713 = vmatprep.subr.mxu0 0.0
        %714 = vmatpush1.msra.mxu0 0.0
        %715 = vmatprep.subr.mxu0 0.0
        %716 = vmatpush1.msra.mxu0 0.0
        %717 = vmatprep.subr.mxu0 0.0
        %718 = vmatpush1.msra.mxu0 0.0
        %719 = vmatprep.subr.mxu0 0.0
        %720 = vmatpush1.msra.mxu0 0.0
        %721 = vmatprep.subr.mxu0 0.0
        %722 = vmatpush1.msra.mxu0 0.0
        %723 = vmatprep.subr.mxu0 0.0
        %724 = vmatpush1.msra.mxu0 0.0
        %725 = vmatprep.subr.mxu0 0.0
        %726 = vmatpush1.msra.mxu0 0.0
        %727 = vmatprep.subr.mxu0 0.0
        %728 = vmatpush1.msra.mxu0 0.0
        %729 = vmatprep.subr.mxu0 0.0
        %730 = vmatpush1.msra.mxu0 0.0
        %731 = vmatprep.subr.mxu0 0.0
        %732 = vmatpush1.msra.mxu0 0.0
        %733 = vmatprep.subr.mxu0 0.0
        %734 = vmatpush1.msra.mxu0 0.0
        %735 = vmatprep.mubr.f32.mxu0 0.0
        %736 = vmatmul.mubr.f32.gmra.mrb[0].mxu0 %v660
        %v737 = vpop.f32.mrb[0].mxu0
        %v738 = vadd.f32 %v642, %v737
        %v739 = vpop.f32.mrb[0].mxu0
        %740 = vmatprep.mubr.f32.mxu0 0.0
        %741 = vmatmul.mubr.f32.gmra.mrb[0].mxu0 %v663
        %v742 = vpop.f32.mrb[0].mxu0
        %v743 = vadd.f32 %v647, %v742
        %v744 = vpop.f32.mrb[0].mxu0
        %745 = vmatprep.mubr.f32.mxu0 0.0
        %746 = vmatmul.mubr.f32.gmra.mrb[0].mxu0 %v666
        %v747 = vpop.f32.mrb[0].mxu0
        %v748 = vadd.f32 %v652, %v747
        %v749 = vpop.f32.mrb[0].mxu0
        %750 = vmatprep.mubr.f32.mxu0 0.0
        %751 = vmatmul.mubr.f32.gmra.mrb[0].mxu0 %v669
        %v752 = vpop.f32.mrb[0].mxu0
        %v753 = vadd.f32 %v657, %v752
        %v754 = vpop.f32.mrb[0].mxu0
        %755 = vdwg.mxu0
        %v756 = vtanh.pop %v738
        %v757 = vtanh.pop %v743
        %v758 = vtanh.pop %v748
        %v759 = vtanh.pop %v753
        %v760 = vld [vmem:[%s5] sm:$0xff]
        %v761 = vld [vmem:[%s5 + $0x8] sm:$0xff]
        %v762 = vld [vmem:[%s5 + $0x10] sm:$0xff]
        %v763 = vld [vmem:[%s5 + $0x18] sm:$0xff]
        %765 = vset.pattern.permute.xlu0 0
        %766 = vperm.xlu0 %765, %v760
        %v767 = vpop.permute.xlu0 %766
        %770 = vset.pattern.permute.xlu0 0
        %771 = vperm.xlu0 %770, %v761
        %v772 = vpop.permute.xlu0 %771
        %775 = vset.pattern.permute.xlu0 0
        %776 = vperm.xlu0 %775, %v762
        %v777 = vpop.permute.xlu0 %776
        %780 = vset.pattern.permute.xlu0 0
        %781 = vperm.xlu0 %780, %v763
        %v782 = vpop.permute.xlu0 %781
        %v784 = vmul.f32 %v767, %v756
        %v785 = vmul.f32 %v772, %v757
        %v786 = vmul.f32 %v777, %v758
        %v787 = vmul.f32 %v782, %v759
        %v788 = vadd.f32 %v784, %v785
        %v789 = vadd.f32 %v788, %v786
        %v790 = vadd.f32 %v789, %v787
        %v791 = vrot.slane %v790, 4
        %v792 = vadd.f32 %v790, %v791
        %v793 = vrot.slane %v792, 2
        %v794 = vadd.f32 %v792, %v793
        %v795 = vrot.slane %v794, 1
        %v796 = vadd.f32 %v794, %v795
        %v797 = vld [vmem:[#allocation2] sm:$0x1]
        %799 = vset.pattern.permute.xlu0 0
        %800 = vperm.xlu0 %799, %v797
        %v801 = vpop.permute.xlu0 %800
        %v803 = vlaneseq
        %v804 = vshrl.u32 %v803, 7
        %v805 = vsub.s32 0, %v804
        %v806 = vrot.slane %v801, %v805
        %v807 = vadd.f32 %v796, %v806
        %808 = vst [vmem:[%s270] sm:$0x1] %v807
        %s809 = sand.u32 %s183, 1
        %s810 = scalar_lea.sflag [#allocation4], %s809
        %s811 = sand.u32 %s183, 1
        %s812 = scalar_lea.vmem [#allocation3], %s811
        // Predicated region
        $region49: #{tpu_custom_call.1} parent=47 // pred_check
          %p813 = pneg %p193
        $region50: #{tpu_custom_call.1} parent=47 // pred_check_branch
          %815 = sbr.rel (%p813) target = $region52
        $region51: #{tpu_custom_call.1} parent=47 // pred_region
          %s817 = ssub.s32 16, 16
          %818 = vsyncadd %s810, %s817
          %s819 = smul.addr %s23, 16
          %s820 = scalar_lea.hbm %s7, %s819
          %s822 = sshll.u32 %s812, 4
          %s823 = int_to_ptr.vmem [resolvable:$true] %s822
          %825 = dma.vmem_to_hbm [thread:$0]  %s823, 16, %s820, %s810
        $region52: #{tpu_custom_call.1} parent=47 // pred_fallthru
          _
      $region48: #{tpu_custom_call.1} parent=5 // pred_fallthru
        _
      %p826 = scmp.le.s32.totalorder 2, %s18
      // Predicated region
      $region53: #{tpu_custom_call.1} parent=5 // pred_check
        %p827 = pneg %p826
      $region54: #{tpu_custom_call.1} parent=5 // pred_check_branch
        %829 = sbr.rel (%p827) target = $region56
      $region55: #{tpu_custom_call.1} parent=5 // pred_region
        %s830 = ssub.s32 %s18, 2
        // Predicated region
        $region57: #{tpu_custom_call.1} parent=55 // pred_check
          %p831 = pneg %p199
        $region58: #{tpu_custom_call.1} parent=55 // pred_check_branch
          %833 = sbr.rel (%p831) target = $region60
        $region59: #{tpu_custom_call.1} parent=55 // pred_region
          %s834 = sand.u32 %s184, 1
          %s835 = scalar_lea.sflag [#allocation4], %s834
          %s836 = sand.u32 %s184, 1
          %s837 = scalar_lea.vmem [#allocation3], %s836
          %838 = dma.done %s835, 16
        $region60: #{tpu_custom_call.1} parent=55 // pred_fallthru
          _
      $region56: #{tpu_custom_call.1} parent=5 // pred_fallthru
        _
    $region6: #{tpu_custom_call.1} parent=1 // loop_footer
      %s22 = sadd.s32 1, %s18
    $region7: #{tpu_custom_call.1} parent=1 // loop_footer_branch
      %17 = sbr.rel target = $region3
    $region8: #{tpu_custom_call.1} parent=1 // loop_exit
      _
    %839 = vsyncpa [#allocation4], 1
    %s840 = scalar_lea.sflag [#allocation4], 1
    %841 = vsyncpa %s840, 1

</llo_original>
